<compile_context>
chip_gen: v7x
topology: tpu7x:2x2x1
jax: 0.10.0
libtpu: 0.0.40
codegen_flags: <defaults>
</compile_context>

<pallas_src>
import functools

import numpy as np
import jax
import jax.numpy as jnp
from jax.experimental import pallas as pl
from jax.experimental.pallas import tpu as pltpu


def _round_up(x, m):
    return ((x + m - 1) // m) * m


def _choose_batch_tile(batch, max_tile):
    """Large batch tiles (MXU row utilization), multiple of 8, but keep >= 2 grid
    steps when the batch allows it so v7x's two TensorCores both get work.
    max_tile=128 is a good choice on v5e, 256 on v6e/v7x."""
    b_pad = max(_round_up(batch, 8), 8)
    if b_pad <= 8:
        return b_pad
    half = _round_up(pl.cdiv(b_pad, 2), 8)
    return min(max_tile, half)


def _coda_cond_kernel(x_ref, w_ref, p_ref, out_ref, *, scale):
    # x_ref: (bt, D)            query tile (batch-tiled)
    # w_ref: (D, f_pad)         precomputed (A*K).T, zero-padded columns (resident)
    # p_ref: (f_pad, Lp*emb_d)  flattened prompt values, zero-padded rows (resident)
    logits = jnp.dot(x_ref[...], w_ref[...],
                     preferred_element_type=jnp.float32) * scale      # (bt, f_pad) f32
    aq_k = jax.nn.sigmoid(logits)                                     # EUP slot
    out_ref[...] = jnp.dot(aq_k.astype(p_ref.dtype), p_ref[...],
                           preferred_element_type=jnp.float32).astype(out_ref.dtype)


def coda_prompt_cond_pallas(x_querry, K, A, p, *,
                            compute_dtype=jnp.bfloat16,
                            out_dtype=jnp.float32,
                            max_batch_tile=256):
    """P_ = sigmoid((x @ (A*K).T) * D**-0.5) @ p, fused on the MXU.

    Returns (B, Lp, emb_d) in `out_dtype`.
    """
    B, D = x_querry.shape
    f, Lp, emb_d = p.shape
    assert K.shape == (f, D) and A.shape == (f, D)
    LD = Lp * emb_d
    scale = float(D) ** -0.5

    # ---- parameter-only preprocessing (hoisted out of the kernel) -----------
    W = (A.astype(jnp.float32) * K.astype(jnp.float32)).T              # (D, f)
    p_flat = p.reshape(f, LD).astype(jnp.float32)                      # (f, LD)

    # Pad the pool dim so layouts are sublane-aligned. Zero W columns give
    # sigmoid(0)=0.5 but the matching zero p rows contribute nothing to P_.
    f_pad = max(_round_up(f, 8), 8)
    if f_pad != f:
        W = jnp.pad(W, ((0, 0), (0, f_pad - f)))
        p_flat = jnp.pad(p_flat, ((0, f_pad - f), (0, 0)))

    # ---- batch tiling / padding (no divisibility requirement) ---------------
    bt = _choose_batch_tile(B, max_batch_tile)
    grid = pl.cdiv(max(B, 1), bt)
    B_pad = grid * bt
    x = x_querry.astype(jnp.float32)
    if B_pad != B:
        x = jnp.pad(x, ((0, B_pad - B), (0, 0)))

    x = x.astype(compute_dtype)
    W = W.astype(compute_dtype)
    p_flat = p_flat.astype(compute_dtype)

    in_bytes = (x.size * x.dtype.itemsize + W.size * W.dtype.itemsize
                + p_flat.size * p_flat.dtype.itemsize)
    out_bytes = B_pad * LD * jnp.dtype(out_dtype).itemsize
    cost = pl.CostEstimate(
        flops=int(2 * B_pad * D * f_pad + 2 * B_pad * f_pad * LD),
        transcendentals=int(B_pad * f_pad),                            # sigmoid
        bytes_accessed=int(in_bytes + out_bytes),
    )

    out = pl.pallas_call(
        functools.partial(_coda_cond_kernel, scale=scale),
        out_shape=jax.ShapeDtypeStruct((B_pad, LD), out_dtype),
        grid_spec=pltpu.PrefetchScalarGridSpec(
            num_scalar_prefetch=0,
            grid=(grid,),
            in_specs=[
                pl.BlockSpec((bt, D), lambda i: (i, 0)),       # x tile over batch
                pl.BlockSpec((D, f_pad), lambda i: (0, 0)),    # W resident in VMEM
                pl.BlockSpec((f_pad, LD), lambda i: (0, 0)),   # p resident in VMEM
            ],
            out_specs=pl.BlockSpec((bt, LD), lambda i: (i, 0)),
        ),
        compiler_params=pltpu.CompilerParams(
            dimension_semantics=("parallel",),
            vmem_limit_bytes=48 * 1024 * 1024,   # above the 16 MiB v5e default
        ),
        cost_estimate=cost,
    )(x, W, p_flat)

    return out[:B].reshape(B, Lp, emb_d)


def _init_prompt_param(key, pool, dims, ortho_rows):
    """tensor_prompt(uniform init) followed by gram_schmidt at task_count=0:
    rows [0:ortho_rows) become mutually orthonormal unit vectors (drawn fresh),
    remaining rows keep the uniform init."""
    shape = (pool,) + tuple(dims)
    k1, k2 = jax.random.split(key)
    base = jax.random.uniform(k1, shape, dtype=jnp.float32)
    flat = int(np.prod(dims))
    g = jax.random.normal(k2, (flat, ortho_rows), dtype=jnp.float32)
    q, _ = jnp.linalg.qr(g)                       # orthonormal columns
    ortho = q.T.reshape((ortho_rows,) + tuple(dims))
    return base.at[:ortho_rows].set(ortho)


class CodaPromptCondPallas:
    """JAX/Pallas port of CodaPromptCond (inference / eval forward path)."""

    def __init__(self, emb_d, n_tasks, prompt_param, key_dim=768, seed=0):
        self.task_count = 0
        self.emb_d = emb_d
        self.key_d = key_dim
        self.n_tasks = n_tasks
        self.e_pool_size = int(prompt_param[0])
        self.e_p_length = int(prompt_param[1])
        self.e_layers = [0, 1, 2, 3, 4]
        self.ortho_mu = prompt_param[2]
        self.FPS = True   # CodaPromptCond forces FPS=True (uses the full pool)

        pt = self.e_pool_size // self.n_tasks
        key = jax.random.PRNGKey(seed)
        self.e_p, self.e_k, self.e_a = {}, {}, {}
        for e in self.e_layers:
            key, kp, kk, ka = jax.random.split(key, 4)
            self.e_p[e] = _init_prompt_param(kp, self.e_pool_size,
                                             (self.e_p_length, self.emb_d), pt)
            self.e_k[e] = _init_prompt_param(kk, self.e_pool_size, (self.key_d,), pt)
            self.e_a[e] = _init_prompt_param(ka, self.e_pool_size, (self.key_d,), pt)

    def forward(self, x_querry, l, x_block, train=False, task_id=None,
                return_aqk=False, concepts=None):
        # Image-wise conditioning: the query is the mean token of x_block.
        x_querry = jnp.mean(x_block, axis=1)

        if l not in self.e_layers:
            if return_aqk:
                return None, 0.0, x_block, None
            return None, 0.0, x_block

        f = self.e_pool_size            # FPS == True for CodaPromptCond
        K = self.e_k[l][:f]
        A = self.e_a[l][:f]
        p = self.e_p[l][:f]

        # TODO(synk): train-mode detach-based gradient masking and the ortho_penalty
        # loss are autograd-only semantics and are not reproduced; P_ is identical.
        if concepts is None:
            P_ = coda_prompt_cond_pallas(x_querry, K, A, p)
            aq_k = None
            if return_aqk:
                # cheap (B, f) side output, recomputed outside the fused kernel
                aq_k = jax.nn.sigmoid(
                    jnp.einsum('bd,od->bo', x_querry, A * K) * (self.key_d ** -0.5))
        else:
            # TODO(synk): concepts path is a single plain matmul; kept in plain JAX.
            aq_k = concepts
            P_ = jnp.einsum('bo,old->bld', aq_k, p)

        i = self.e_p_length // 2
        Ek = P_[:, :i, :]
        Ev = P_[:, i:, :]
        if return_aqk:
            return [Ek, Ev], 0.0, x_block, aq_k
        return [Ek, Ev], 0.0, x_block


def _reference_P(x, K, A, p):
    """float64 numpy mirror of the literal PyTorch einsum chain (attn_normal)."""
    x = np.asarray(x, np.float64)
    K = np.asarray(K, np.float64)
    A = np.asarray(A, np.float64)
    p = np.asarray(p, np.float64)
    a_q = x[:, None, :] * A[None, :, :]
    aq_k = np.einsum('bod,od->bo', a_q, K) * (K.shape[-1] ** (-0.5))
    aq_k = 1.0 / (1.0 + np.exp(-aq_k))
    return np.einsum('bo,old->bld', aq_k, p)


if __name__ == "__main__":
    # Small shapes consistent with the module. x_querry = mean(x_block) has dim emb_d,
    # so key_dim == emb_d here.
    emb_d = 32
    key_dim = 32
    n_tasks = 2
    e_pool_size = 12          # not a multiple of 8: exercises the pool-padding path
    e_p_length = 8
    prompt_param = [e_pool_size, e_p_length, 0.0]
    B, seq = 16, 10
    layer = 0

    model = CodaPromptCondPallas(emb_d, n_tasks, prompt_param, key_dim=key_dim, seed=0)

    key = jax.random.PRNGKey(0)
    x_block = jax.random.normal(key, (B, seq, emb_d), dtype=jnp.float32)

    (Ek, Ev), loss, xb = model.forward(None, layer, x_block, train=False)
    jax.block_until_ready(Ek)
    jax.block_until_ready(Ev)

    # Reference of the original einsum chain.
    x_querry = jnp.mean(x_block, axis=1)
    f = e_pool_size
    K, A, p = model.e_k[layer][:f], model.e_a[layer][:f], model.e_p[layer][:f]
    P_ref = _reference_P(x_querry, K, A, p)

    # Default (bf16 compute, f32 accumulate) path.
    P_kernel = jnp.concatenate([Ek, Ev], axis=1)
    np.testing.assert_allclose(np.asarray(P_kernel), P_ref, rtol=5e-2, atol=5e-2)

    # fp32 compute path: verifies the fused-matmul math tightly.
    P_f32 = coda_prompt_cond_pallas(x_querry, K, A, p, compute_dtype=jnp.float32)
    jax.block_until_ready(P_f32)
    np.testing.assert_allclose(np.asarray(P_f32), P_ref, rtol=5e-4, atol=5e-4)

    assert Ek.shape == (B, e_p_length // 2, emb_d)
    assert Ev.shape == (B, e_p_length // 2, emb_d)

    print("KERNEL_OK")
</pallas_src>

<mosaic_0001>
module attributes {stable_mosaic.version = 11 : i64} {
  func.func @_coda_cond_kernel(%arg0: i32, %arg1: memref<8x32xbf16, #tpu.memory_space<vmem>>, %arg2: memref<32x16xbf16, #tpu.memory_space<vmem>>, %arg3: memref<16x256xbf16, #tpu.memory_space<vmem>>, %arg4: memref<8x256xf32, #tpu.memory_space<vmem>>) attributes {dimension_semantics = [#tpu.dimension_semantics<parallel>], iteration_bounds = array<i64: 2>, scalar_prefetch = 0 : i64, scratch_operands = 0 : i64, tpu.core_type = #tpu.core_type<tc>, window_params = [{transform_indices = @transform_0, window_bounds = array<i64: 8, 32>}, {pipeline_mode = #tpu.pipeline_mode<synchronous>, transform_indices = @transform_1, window_bounds = array<i64: 32, 16>}, {pipeline_mode = #tpu.pipeline_mode<synchronous>, transform_indices = @transform_2, window_bounds = array<i64: 16, 256>}, {transform_indices = @transform_3, window_bounds = array<i64: 8, 256>}]} {
    %c0 = arith.constant 0 : index
    %c0_0 = arith.constant 0 : index
    %0 = vector.load %arg1[%c0, %c0_0] : memref<8x32xbf16, #tpu.memory_space<vmem>>, vector<8x32xbf16>
    %c0_1 = arith.constant 0 : index
    %c0_2 = arith.constant 0 : index
    %1 = vector.load %arg2[%c0_1, %c0_2] : memref<32x16xbf16, #tpu.memory_space<vmem>>, vector<32x16xbf16>
    %cst = arith.constant dense<0.000000e+00> : vector<8x16xf32>
    %2 = tpu.matmul %0, %1, %cst {dimension_numbers = #tpu.dot_dimension_numbers<[1], [0], [0], [1], [0, 0, 1, 1], [], []>} : vector<8x32xbf16>, vector<32x16xbf16>, vector<8x16xf32> -> vector<8x16xf32>
    %cst_3 = arith.constant 0.176776692 : f32
    %3 = vector.broadcast %cst_3 : f32 to vector<8x16xf32>
    %4 = arith.mulf %2, %3 : vector<8x16xf32>
    %5 = arith.negf %4 : vector<8x16xf32>
    %6 = math.exp %5 : vector<8x16xf32>
    %cst_4 = arith.constant 1.000000e+00 : f32
    %7 = vector.broadcast %cst_4 : f32 to vector<8x16xf32>
    %8 = arith.addf %7, %6 : vector<8x16xf32>
    %9 = arith.divf %7, %8 : vector<8x16xf32>
    %10 = arith.truncf %9 : vector<8x16xf32> to vector<8x16xbf16>
    %c0_5 = arith.constant 0 : index
    %c0_6 = arith.constant 0 : index
    %11 = vector.load %arg3[%c0_5, %c0_6] : memref<16x256xbf16, #tpu.memory_space<vmem>>, vector<16x256xbf16>
    %cst_7 = arith.constant dense<0.000000e+00> : vector<8x256xf32>
    %12 = tpu.matmul %10, %11, %cst_7 {dimension_numbers = #tpu.dot_dimension_numbers<[1], [0], [0], [1], [0, 0, 1, 1], [], []>} : vector<8x16xbf16>, vector<16x256xbf16>, vector<8x256xf32> -> vector<8x256xf32>
    %c0_8 = arith.constant 0 : index
    %c0_9 = arith.constant 0 : index
    %13 = vector.load %arg4[%c0_8, %c0_9] : memref<8x256xf32, #tpu.memory_space<vmem>>, vector<8x256xf32>
    tpu.vector_store %arg4[%c0_8, %c0_9], %12 {strides = array<i32>} : memref<8x256xf32, #tpu.memory_space<vmem>>, vector<8x256xf32>,
    return
  }
  func.func @transform_0(%arg0: i32) -> (i32, i32) {
    %c0_i32 = arith.constant 0 : i32
    %c0_i32_0 = arith.constant 0 : i32
    return %arg0, %c0_i32 : i32, i32
  }
  func.func @transform_1(%arg0: i32) -> (i32, i32) {
    %c0_i32 = arith.constant 0 : i32
    %c0_i32_0 = arith.constant 0 : i32
    %c0_i32_1 = arith.constant 0 : i32
    return %c0_i32, %c0_i32_0 : i32, i32
  }
  func.func @transform_2(%arg0: i32) -> (i32, i32) {
    %c0_i32 = arith.constant 0 : i32
    %c0_i32_0 = arith.constant 0 : i32
    %c0_i32_1 = arith.constant 0 : i32
    return %c0_i32, %c0_i32_0 : i32, i32
  }
  func.func @transform_3(%arg0: i32) -> (i32, i32) {
    %c0_i32 = arith.constant 0 : i32
    %c0_i32_0 = arith.constant 0 : i32
    return %arg0, %c0_i32 : i32, i32
  }
}

</mosaic_0001>

<llo_original>
// kernel: tpu_custom_call.1
$region0: #{tpu_custom_call.1}
  #allocation0 [shape = 'u32[]', space=smem, size = 0x4, offset = 0x4, fixed_abs, tag = 'smem constant byte address 0x4 - core index']
  #allocation1 [shape = 'u32[144,128]{1,0:T(1,128)}', space=vmem, size = 0x12000, scoped, tag = 'internal scratch']
  %s0 = inlined_call_operand.vmem [shape: bf16[16,32], index: 0, kind: input, shape index: {}]
  %s1 = inlined_call_operand.vmem [shape: bf16[32,16], index: 1, kind: input, shape index: {}]
  %s2 = inlined_call_operand.vmem [shape: bf16[16,256], index: 2, kind: input, shape index: {}]
  %s3 = inlined_call_operand.hbm [shape: f32[16,256], index: 3, kind: output, shape index: {}]
  %s4 = sld [smem:[#allocation0]]
  $region45: #{tpu_custom_call.1} parent=0
    _
  %s6 = ssub.s32 1, %s4
  %s7 = scalar_select 0, %s6, %s4
  $region1: #{tpu_custom_call.1} parent=0
    #allocation2 [shape = 'u8[16384]{0}', space=vmem, size = 0x4000, scoped, tag = 'output window, operand 0']
    #allocation3 [shape = 's32[2]{0}', space=sflag, size = 0x8, scoped, tag = 'scoped memory for tpu_custom_call.1']
    %8 = vsyncpa [#allocation3], 0
    %s9 = scalar_lea.sflag [#allocation3], 1
    %10 = vsyncpa %s9, 0
    loop: start=0, step=1, limit=4
    $region2: #{tpu_custom_call.1} parent=1 // loop_pre_header
      _
    $region3: #{tpu_custom_call.1} parent=1 // loop_header
      %s12 = sphi 0, %s16
      %p13 = scmp.ge.s32.totalorder %s12, 4
      %s22 = sphi 0, %s24
      %s25 = sphi 0, %s22
      %s26 = sphi 0, %s25
      %s42 = sphi 0, %s26
      %s46 = sphi 0, %s46
      %s48 = sphi 0, %s46
      %s49 = sphi 0, %s48
      %s63 = sphi 0, %s49
      %s67 = sphi 0, %s67
      %s69 = sphi 0, %s67
      %s70 = sphi 0, %s69
      %s84 = sphi 0, %s70
      %s90 = sphi 0, %s92
      %s93 = sphi 0, %s90
      %s94 = sphi 0, %s93
      %s110 = sphi 0, %s94
    $region4: #{tpu_custom_call.1} parent=1 // loop_header_branch
      %15 = sbr.rel (%p13) target = $region8
    $region5: #{tpu_custom_call.1} parent=1 // loop_body
      %s17 = ssub.s32 %s12, 1
      %s18 = ssub.s32 %s12, 2
      %s19 = sadd.s32 %s12, 1
      %s20 = ssub.s32 %s12, %s19
      %p21 = scmp.eq.s32.totalorder %s20, 0
      %s23 = sadd.s32 %s22, 1
      %s24 = scalar_select %p21, %s22, %s23
      %p27 = pneg %p21
      %p28 = scmp.eq.s32.totalorder %s12, 1
      %p29 = por %p27, %p28
      %p30 = scmp.ne.s32.totalorder %s22, %s25
      %p31 = scmp.eq.s32.totalorder %s12, 0
      %p32 = por %p30, %p31
      %p33 = scmp.ne.s32.totalorder %s22, %s25
      %p34 = scmp.eq.s32.totalorder %s17, 1
      %p35 = por %p33, %p34
      %p36 = scmp.ne.s32.totalorder %s25, %s26
      %p37 = scmp.eq.s32.totalorder %s17, 0
      %p38 = por %p36, %p37
      %p39 = scmp.ne.s32.totalorder %s25, %s26
      %p40 = scmp.eq.s32.totalorder %s18, 1
      %p41 = por %p39, %p40
      %p43 = scmp.ne.s32.totalorder %s26, %s42
      %p44 = scmp.eq.s32.totalorder %s18, 0
      %p45 = por %p43, %p44
      %s47 = sadd.s32 %s46, 1
      %p50 = scmp.eq.s32.totalorder %s12, 1
      %p51 = scmp.ne.s32.totalorder %s46, %s48
      %p52 = scmp.eq.s32.totalorder %s12, 0
      %p53 = por %p51, %p52
      %p54 = scmp.ne.s32.totalorder %s46, %s48
      %p55 = scmp.eq.s32.totalorder %s17, 1
      %p56 = por %p54, %p55
      %p57 = scmp.ne.s32.totalorder %s48, %s49
      %p58 = scmp.eq.s32.totalorder %s17, 0
      %p59 = por %p57, %p58
      %p60 = scmp.ne.s32.totalorder %s48, %s49
      %p61 = scmp.eq.s32.totalorder %s18, 1
      %p62 = por %p60, %p61
      %p64 = scmp.ne.s32.totalorder %s49, %s63
      %p65 = scmp.eq.s32.totalorder %s18, 0
      %p66 = por %p64, %p65
      %s68 = sadd.s32 %s67, 1
      %p71 = scmp.eq.s32.totalorder %s12, 1
      %p72 = scmp.ne.s32.totalorder %s67, %s69
      %p73 = scmp.eq.s32.totalorder %s12, 0
      %p74 = por %p72, %p73
      %p75 = scmp.ne.s32.totalorder %s67, %s69
      %p76 = scmp.eq.s32.totalorder %s17, 1
      %p77 = por %p75, %p76
      %p78 = scmp.ne.s32.totalorder %s69, %s70
      %p79 = scmp.eq.s32.totalorder %s17, 0
      %p80 = por %p78, %p79
      %p81 = scmp.ne.s32.totalorder %s69, %s70
      %p82 = scmp.eq.s32.totalorder %s18, 1
      %p83 = por %p81, %p82
      %p85 = scmp.ne.s32.totalorder %s70, %s84
      %p86 = scmp.eq.s32.totalorder %s18, 0
      %p87 = por %p85, %p86
      %s88 = ssub.s32 %s12, %s19
      %p89 = scmp.eq.s32.totalorder %s88, 0
      %s91 = sadd.s32 %s90, 1
      %s92 = scalar_select %p89, %s90, %s91
      %p95 = pneg %p89
      %p96 = scmp.eq.s32.totalorder %s12, 1
      %p97 = por %p95, %p96
      %p98 = scmp.ne.s32.totalorder %s90, %s93
      %p99 = scmp.eq.s32.totalorder %s12, 0
      %p100 = por %p98, %p99
      %p101 = scmp.ne.s32.totalorder %s90, %s93
      %p102 = scmp.eq.s32.totalorder %s17, 1
      %p103 = por %p101, %p102
      %p104 = scmp.ne.s32.totalorder %s93, %s94
      %p105 = scmp.eq.s32.totalorder %s17, 0
      %p106 = por %p104, %p105
      %p107 = scmp.ne.s32.totalorder %s93, %s94
      %p108 = scmp.eq.s32.totalorder %s18, 1
      %p109 = por %p107, %p108
      %p111 = scmp.ne.s32.totalorder %s94, %s110
      %p112 = scmp.eq.s32.totalorder %s18, 0
      %p113 = por %p111, %p112
      %p114 = scmp.le.s32.totalorder 1, %s12
      %p115 = scmp.lt.s32.totalorder %s12, 3
      %p116 = pnand %p114, %p115
      %p117 = pneg %p116
      // Predicated region
      $region9: #{tpu_custom_call.1} parent=5 // pred_check
        _
      $region10: #{tpu_custom_call.1} parent=5 // pred_check_branch
        %119 = sbr.rel (%p116) target = $region12
      $region11: #{tpu_custom_call.1} parent=5 // pred_region
        %s120 = ssub.s32 %s12, 1
        // Predicated region
        $region13: #{tpu_custom_call.1} parent=11 // pred_check
          %p121 = pneg %p59
        $region14: #{tpu_custom_call.1} parent=11 // pred_check_branch
          %123 = sbr.rel (%p121) target = $region16
        $region15: #{tpu_custom_call.1} parent=11 // pred_region
          _
        $region16: #{tpu_custom_call.1} parent=11 // pred_fallthru
          _
        // Predicated region
        $region17: #{tpu_custom_call.1} parent=11 // pred_check
          %p124 = pneg %p80
        $region18: #{tpu_custom_call.1} parent=11 // pred_check_branch
          %126 = sbr.rel (%p124) target = $region20
        $region19: #{tpu_custom_call.1} parent=11 // pred_region
          _
        $region20: #{tpu_custom_call.1} parent=11 // pred_fallthru
          _
      $region12: #{tpu_custom_call.1} parent=5 // pred_fallthru
        _
      %p127 = scmp.lt.s32.totalorder %s12, 2
      // Predicated region
      $region21: #{tpu_custom_call.1} parent=5 // pred_check
        %p128 = pneg %p127
      $region22: #{tpu_custom_call.1} parent=5 // pred_check_branch
        %130 = sbr.rel (%p128) target = $region24
      $region23: #{tpu_custom_call.1} parent=5 // pred_region
        // Predicated region
        $region25: #{tpu_custom_call.1} parent=23 // pred_check
          %p131 = pneg %p32
        $region26: #{tpu_custom_call.1} parent=23 // pred_check_branch
          %133 = sbr.rel (%p131) target = $region28
        $region27: #{tpu_custom_call.1} parent=23 // pred_region
          %p134 = scmp.lt.s32.totalorder %s12, 1
          %s135 = scalar_select %p134, %s12, 1
          %s136 = smul.addr %s135, 4
          %s137 = scalar_lea.vmem %s0, %s136
        $region28: #{tpu_custom_call.1} parent=23 // pred_fallthru
          _
      $region24: #{tpu_custom_call.1} parent=5 // pred_fallthru
        _
      %p138 = scmp.le.s32.totalorder 1, %s12
      %p139 = scmp.lt.s32.totalorder %s12, 3
      %p140 = pnand %p138, %p139
      %p141 = pneg %p140
      // Predicated region
      $region29: #{tpu_custom_call.1} parent=5 // pred_check
        _
      $region30: #{tpu_custom_call.1} parent=5 // pred_check_branch
        %143 = sbr.rel (%p140) target = $region32
      $region31: #{tpu_custom_call.1} parent=5 // pred_region
        %s144 = ssub.s32 %s12, 1
        %p145 = scmp.lt.s32.totalorder %s17, 1
        %s146 = scalar_select %p145, %s17, 1
        %s147 = smul.addr %s146, 4
        %s148 = scalar_lea.vmem %s0, %s147
        %p149 = pneg %p38
        %p150 = pneg %p35
        %p151 = pneg %p59
        %p152 = pneg %p56
        %p153 = pneg %p80
        %p154 = pneg %p77
        %p155 = pneg %p106
        %p156 = pneg %p103
        %s157 = sand.u32 %s93, 1
        %s158 = scalar_lea.sflag [#allocation3], %s157
        %s159 = sand.u32 %s93, 1
        %s160 = smul.addr %s159, 16
        %s161 = scalar_lea.vmem [#allocation2], %s160
        %p162 = scmp.lt.s32.totalorder %s17, 1
        %s163 = scalar_select %p162, %s17, 1
        %s164 = smul.addr %s163, 4
        %s165 = scalar_lea.vmem %s0, %s164
        %v167 = vld [vmem:[%s165] sm:$0xf]
        %v168 = vld [vmem:[%s1] sm:$0xf]
        %v169 = vld [vmem:[%s1 + $0x4] sm:$0xf]
        %v170 = vld [vmem:[%s1 + $0x8] sm:$0xf]
        %v171 = vld [vmem:[%s1 + $0xc] sm:$0xf]
        %v176 = vunpack.c.l.b16 %v168
        %v177 = vunpack.c.l.b16 %v169
        %v178 = vunpack.c.l.b16 %v170
        %v179 = vunpack.c.l.b16 %v171
        %v180 = vpack.c.b16 %v177, %v176
        %v181 = vpack.c.b16 %v179, %v178
        %vm184 = vcmask 261120
        %v186 = vsel %vm184, %v167, 0
        %188 = vmatprep.subr.bf16.mxu0 0
        %189 = vmatpush1.bf16.msra.mxu0 %v180
        %190 = vmatprep.subr.bf16.mxu0 0
        %191 = vmatpush1.bf16.msra.mxu0 %v181
        %192 = vmatprep.subr.bf16.mxu0 0
        %193 = vmatpush1.bf16.msra.mxu0 0
        %194 = vmatprep.subr.bf16.mxu0 0
        %195 = vmatpush1.bf16.msra.mxu0 0
        %196 = vmatprep.subr.bf16.mxu0 0
        %197 = vmatpush1.bf16.msra.mxu0 0
        %198 = vmatprep.subr.bf16.mxu0 0
        %199 = vmatpush1.bf16.msra.mxu0 0
        %200 = vmatprep.subr.bf16.mxu0 0
        %201 = vmatpush1.bf16.msra.mxu0 0
        %202 = vmatprep.subr.bf16.mxu0 0
        %203 = vmatpush1.bf16.msra.mxu0 0
        %204 = vmatprep.subr.bf16.mxu0 0
        %205 = vmatpush1.bf16.msra.mxu0 0
        %206 = vmatprep.subr.bf16.mxu0 0
        %207 = vmatpush1.bf16.msra.mxu0 0
        %208 = vmatprep.subr.bf16.mxu0 0
        %209 = vmatpush1.bf16.msra.mxu0 0
        %210 = vmatprep.subr.bf16.mxu0 0
        %211 = vmatpush1.bf16.msra.mxu0 0
        %212 = vmatprep.subr.bf16.mxu0 0
        %213 = vmatpush1.bf16.msra.mxu0 0
        %214 = vmatprep.subr.bf16.mxu0 0
        %215 = vmatpush1.bf16.msra.mxu0 0
        %216 = vmatprep.subr.bf16.mxu0 0
        %217 = vmatpush1.bf16.msra.mxu0 0
        %218 = vmatprep.subr.bf16.mxu0 0
        %219 = vmatpush1.bf16.msra.mxu0 0
        %220 = vmatprep.mubr.bf16.mxu0 0
        %221 = vmatmul.mubr.bf16.gmra.mrb[0].mxu0 %v186
        %v222 = vpop.f32.mrb[0].mxu0
        %v223 = vadd.f32 0.0, %v222
        %v224 = vpop.f32.mrb[0].mxu0
        %v225 = vpop.f32.mrb[0].mxu0
        %v226 = vpop.f32.mrb[0].mxu0
        %227 = vdwg.mxu0
        %v228 = vmul.f32 %v223, 0.17677669
        %v229 = vxor.u32 %v228, 2147483648
        %v230 = vmul.f32 %v229, 1.442695
        %v231 = vpow.pop %v230
        %v232 = vadd.f32 %v231, 1.0
        %v233 = vrcp.pop %v232
        %v234 = vmul.f32 1.0, %v233
        %v235 = vpack.c.bf16 %v234, %v234
        %v236 = vld [vmem:[%s2] sm:$0xff]
        %v237 = vld [vmem:[%s2 + $0x8] sm:$0xff]
        %v240 = vunpack.c.l.b16 %v236
        %v241 = vunpack.c.h.b16 %v236
        %v242 = vunpack.c.l.b16 %v237
        %v243 = vunpack.c.h.b16 %v237
        %v244 = vpack.c.b16 %v242, %v240
        %v245 = vpack.c.b16 %v243, %v241
        %vm248 = vcmask 130048
        %v250 = vsel %vm248, %v235, 0
        %252 = vmatprep.subr.bf16.mxu0 %v245
        %253 = vmatpush1.bf16.msra.mxu0 %v244
        %254 = vmatprep.subr.bf16.mxu0 0
        %255 = vmatpush1.bf16.msra.mxu0 0
        %256 = vmatprep.subr.bf16.mxu0 0
        %257 = vmatpush1.bf16.msra.mxu0 0
        %258 = vmatprep.subr.bf16.mxu0 0
        %259 = vmatpush1.bf16.msra.mxu0 0
        %260 = vmatprep.subr.bf16.mxu0 0
        %261 = vmatpush1.bf16.msra.mxu0 0
        %262 = vmatprep.subr.bf16.mxu0 0
        %263 = vmatpush1.bf16.msra.mxu0 0
        %264 = vmatprep.subr.bf16.mxu0 0
        %265 = vmatpush1.bf16.msra.mxu0 0
        %266 = vmatprep.subr.bf16.mxu0 0
        %267 = vmatpush1.bf16.msra.mxu0 0
        %268 = vmatprep.subr.bf16.mxu0 0
        %269 = vmatpush1.bf16.msra.mxu0 0
        %270 = vmatprep.subr.bf16.mxu0 0
        %271 = vmatpush1.bf16.msra.mxu0 0
        %272 = vmatprep.subr.bf16.mxu0 0
        %273 = vmatpush1.bf16.msra.mxu0 0
        %274 = vmatprep.subr.bf16.mxu0 0
        %275 = vmatpush1.bf16.msra.mxu0 0
        %276 = vmatprep.subr.bf16.mxu0 0
        %277 = vmatpush1.bf16.msra.mxu0 0
        %278 = vmatprep.subr.bf16.mxu0 0
        %279 = vmatpush1.bf16.msra.mxu0 0
        %280 = vmatprep.subr.bf16.mxu0 0
        %281 = vmatpush1.bf16.msra.mxu0 0
        %282 = vmatprep.subr.bf16.mxu0 0
        %283 = vmatpush1.bf16.msra.mxu0 0
        %284 = vmatprep.mubr.bf16.mxu0 0
        %285 = vmatmul.mubr.bf16.gmra.mrb[0].mxu0 %v250
        %v286 = vpop.f32.mrb[0].mxu0
        %v287 = vadd.f32 0.0, %v286
        %v288 = vpop.f32.mrb[0].mxu0
        %v289 = vadd.f32 0.0, %v288
        %v290 = vpop.f32.mrb[0].mxu0
        %v291 = vpop.f32.mrb[0].mxu0
        %292 = vdwg.mxu0
        %293 = vst [vmem:[%s161] sm:$0xff] %v287
        %294 = vst [vmem:[%s161 + $0x8] sm:$0xff] %v289
        %s295 = sand.u32 %s93, 1
        %s296 = scalar_lea.sflag [#allocation3], %s295
        %s297 = sand.u32 %s93, 1
        %s298 = smul.addr %s297, 16
        %s299 = scalar_lea.vmem [#allocation2], %s298
        // Predicated region
        $region33: #{tpu_custom_call.1} parent=31 // pred_check
          %p300 = pneg %p103
        $region34: #{tpu_custom_call.1} parent=31 // pred_check_branch
          %302 = sbr.rel (%p300) target = $region36
        $region35: #{tpu_custom_call.1} parent=31 // pred_region
          %s304 = ssub.s32 256, 256
          %305 = vsyncadd %s296, %s304
          %s306 = smul.addr %s17, 2
          %s307 = smul.addr %s306, 128
          %s308 = scalar_lea.hbm %s3, %s307
          %s310 = sshll.u32 %s299, 4
          %s311 = int_to_ptr.vmem [resolvable:$true] %s310
          %313 = dma.vmem_to_hbm [thread:$0]  %s311, 256, %s308, %s296
        $region36: #{tpu_custom_call.1} parent=31 // pred_fallthru
          _
      $region32: #{tpu_custom_call.1} parent=5 // pred_fallthru
        _
      %p314 = scmp.le.s32.totalorder 2, %s12
      // Predicated region
      $region37: #{tpu_custom_call.1} parent=5 // pred_check
        %p315 = pneg %p314
      $region38: #{tpu_custom_call.1} parent=5 // pred_check_branch
        %317 = sbr.rel (%p315) target = $region40
      $region39: #{tpu_custom_call.1} parent=5 // pred_region
        %s318 = ssub.s32 %s12, 2
        // Predicated region
        $region41: #{tpu_custom_call.1} parent=39 // pred_check
          %p319 = pneg %p109
        $region42: #{tpu_custom_call.1} parent=39 // pred_check_branch
          %321 = sbr.rel (%p319) target = $region44
        $region43: #{tpu_custom_call.1} parent=39 // pred_region
          %s322 = sand.u32 %s94, 1
          %s323 = scalar_lea.sflag [#allocation3], %s322
          %s324 = sand.u32 %s94, 1
          %s325 = smul.addr %s324, 16
          %s326 = scalar_lea.vmem [#allocation2], %s325
          %327 = dma.done %s323, 256
        $region44: #{tpu_custom_call.1} parent=39 // pred_fallthru
          _
      $region40: #{tpu_custom_call.1} parent=5 // pred_fallthru
        _
    $region6: #{tpu_custom_call.1} parent=1 // loop_footer
      %s16 = sadd.s32 1, %s12
    $region7: #{tpu_custom_call.1} parent=1 // loop_footer_branch
      %11 = sbr.rel target = $region3
    $region8: #{tpu_custom_call.1} parent=1 // loop_exit
      _
    %328 = vsyncpa [#allocation3], 1
    %s329 = scalar_lea.sflag [#allocation3], 1
    %330 = vsyncpa %s329, 1

</llo_original>
